<compile_context>
chip_gen: v7x
topology: tpu7x:2x2x1
jax: 0.10.0
libtpu: 0.0.40
codegen_flags: <defaults>
</compile_context>

<pallas_src>
import jax
import jax.numpy as jnp
from jax.experimental import pallas as pl
from jax.experimental.pallas import tpu as pltpu

KERNEL = 3          # MaxPool2d kernel_size
STRIDE = KERNEL     # PyTorch default: stride = kernel_size


def _pool_identity(dtype):
    """Identity element for max: -inf for floats, INT_MIN for integer dtypes."""
    dtype = jnp.dtype(dtype)
    if jnp.issubdtype(dtype, jnp.floating):
        return float("-inf")
    return int(jnp.iinfo(dtype).min)


def _ceil_pool_dims(size):
    """ceil_mode output size and padded input size for kernel==stride==3."""
    out = -(-(size - KERNEL) // STRIDE) + 1
    padded = (out - 1) * STRIDE + KERNEL
    return out, padded


def _make_maxpool_kernel(H, W, Ho, Wo, Hp, Wp, neg, pad_h, pad_w):
    def kernel(x_ref, o_ref, *scratch):
        # x_ref: (t, H, W) block — NCHW-native: H on sublanes, W on lanes.
        t = x_ref.shape[0]
        dt = o_ref.dtype
        si = 0

        # ---- max over window rows (kh) -----------------------------------------
        if pad_h:
            hbuf = scratch[si]; si += 1            # (t, Hp, W) VMEM scratch
            # ceil_mode: fill only the pad rows with the max identity (VMEM only).
            hbuf[:, H:Hp, :] = jnp.full((t, pad_h, W), neg, dt)
            hbuf[:, 0:H, :] = x_ref[...]
            row_src = hbuf
        else:
            row_src = x_ref
        # stride == kernel: 3 sublane-strided ref loads, no in-vreg strided extracts.
        rows = row_src[:, pl.ds(0, Ho, stride=STRIDE), :]
        for kh in range(1, KERNEL):
            rows = jnp.maximum(rows, row_src[:, pl.ds(kh, Ho, stride=STRIDE), :])
        # rows: (t, Ho, W) — per output row, max over its valid input rows.

        # ---- max over window cols (kw) -----------------------------------------
        # One XLU transpose puts W on the sublane axis of a small scratch, so the kw
        # reduction is also plain sublane-strided ref loads (lane-strided access is
        # the expensive direction on TPU).
        wbuf = scratch[si]; si += 1                # (t, Wp, Ho) VMEM scratch
        if pad_w:
            wbuf[:, W:Wp, :] = jnp.full((t, pad_w, Ho), neg, dt)
        wbuf[:, 0:W, :] = jnp.swapaxes(rows, 1, 2)         # (t, W, Ho)
        outT = wbuf[:, pl.ds(0, Wo, stride=STRIDE), :]
        for kw in range(1, KERNEL):
            outT = jnp.maximum(outT, wbuf[:, pl.ds(kw, Wo, stride=STRIDE), :])
        # outT: (t, Wo, Ho) -> (t, Ho, Wo)
        o_ref[...] = jnp.swapaxes(outT, 1, 2)

    return kernel


def _pick_nc_tile(nc, h, w, itemsize):
    """Largest N*C tile (a divisor of nc) that keeps input block + scratches +
    output, double-buffered, comfortably under the default 32 MiB scoped VMEM —
    works unchanged on v5e/v6e (128 MiB physical) and v7x (64 MiB physical)."""
    budget = 8 << 20                      # conservative per-block byte budget
    per_nc = 4 * h * w * itemsize + 128   # input + padded scratches + output (approx)
    t = max(1, min(nc, budget // per_nc))
    if nc >= 2:                           # >=2 grid steps so v7x can shard across 2 TCs
        t = min(t, -(-nc // 2))
    while nc % t:                         # keep leading-dim blocks exact
        t -= 1
    return t


@jax.jit
def maxpool2d_ceil(x):
    """MaxPool2d(kernel_size=3, stride=3, ceil_mode=True) on NCHW input x."""
    N, C, H, W = x.shape
    NC = N * C
    Ho, Hp = _ceil_pool_dims(H)
    Wo, Wp = _ceil_pool_dims(W)
    # PyTorch drops a ceil_mode window that would start entirely inside the implicit
    # padding.  With stride == kernel_size and padding == 0 the last window always
    # starts inside the input, so Ho/Wo above match PyTorch exactly.
    assert (Ho - 1) * STRIDE < H and (Wo - 1) * STRIDE < W
    pad_h, pad_w = Hp - H, Wp - W
    neg = _pool_identity(x.dtype)

    # Free reshapes only (bitcasts, no HBM pass): NCHW -> (N*C, H, W).
    x3 = x.reshape(NC, H, W)
    tile_nc = _pick_nc_tile(NC, H, W, x.dtype.itemsize)

    scratch_shapes = []
    if pad_h:
        scratch_shapes.append(pltpu.VMEM((tile_nc, Hp, W), x.dtype))
    scratch_shapes.append(pltpu.VMEM((tile_nc, Wp, Ho), x.dtype))

    kernel = _make_maxpool_kernel(H, W, Ho, Wo, Hp, Wp, neg, pad_h, pad_w)
    out = pl.pallas_call(
        kernel,
        out_shape=jax.ShapeDtypeStruct((NC, Ho, Wo), x.dtype),
        grid=(NC // tile_nc,),
        in_specs=[pl.BlockSpec((tile_nc, H, W), lambda i: (i, 0, 0))],
        out_specs=pl.BlockSpec((tile_nc, Ho, Wo), lambda i: (i, 0, 0)),
        scratch_shapes=scratch_shapes,
        compiler_params=pltpu.CompilerParams(
            dimension_semantics=("parallel",)),
    )(x3)

    # Free reshape back to NCHW.
    return out.reshape(N, C, Ho, Wo)


def _reference_maxpool(x):
    """Pure-JAX reference (independent code path, dtype-aware identity)."""
    N, C, H, W = x.shape
    Ho, Hp = _ceil_pool_dims(H)
    Wo, Wp = _ceil_pool_dims(W)
    neg = _pool_identity(x.dtype)
    xp = jnp.pad(x, ((0, 0), (0, 0), (0, Hp - H), (0, Wp - W)),
                 constant_values=neg)
    return xp.reshape(N, C, Ho, KERNEL, Wo, KERNEL).max(axis=(3, 5))


if __name__ == "__main__":
    # batch=2, channels=4, spatial=16x16 — NCHW like the PyTorch module expects.
    x = jax.random.normal(jax.random.PRNGKey(0), (2, 4, 16, 16), dtype=jnp.float32)
    y = jax.block_until_ready(maxpool2d_ceil(x))
    assert y.shape == (2, 4, 6, 6), y.shape
    assert jnp.allclose(y, _reference_maxpool(x)), "Pallas maxpool mismatch (float32)"

    # Integer path exercises the dtype-aware max identity (iinfo.min, not -inf).
    xi = jax.random.randint(jax.random.PRNGKey(1), (2, 4, 16, 16), -1000, 1000,
                            dtype=jnp.int32)
    yi = jax.block_until_ready(maxpool2d_ceil(xi))
    assert jnp.array_equal(yi, _reference_maxpool(xi)), "Pallas maxpool mismatch (int32)"

    print("KERNEL_OK")
</pallas_src>

<mosaic_0001>
module attributes {stable_mosaic.version = 11 : i64} {
  func.func @kernel(%arg0: i32, %arg1: memref<4x16x16xf32, #tpu.memory_space<vmem>>, %arg2: memref<4x6x6xf32, #tpu.memory_space<vmem>>, %arg3: memref<4x18x16xf32, #tpu.memory_space<vmem>>, %arg4: memref<4x18x6xf32, #tpu.memory_space<vmem>>) attributes {dimension_semantics = [#tpu.dimension_semantics<parallel>], iteration_bounds = array<i64: 2>, scalar_prefetch = 0 : i64, scratch_operands = 2 : i64, tpu.core_type = #tpu.core_type<tc>, window_params = [{transform_indices = @transform_0, window_bounds = array<i64: 4, 16, 16>}, {transform_indices = @transform_1, window_bounds = array<i64: 4, 6, 6>}]} {
    %cst = arith.constant 0xFF800000 : f32
    %0 = vector.broadcast %cst : f32 to vector<4x2x16xf32>
    %c0 = arith.constant 0 : index
    %c16 = arith.constant 16 : index
    %c0_0 = arith.constant 0 : index
    %1 = vector.load %arg3[%c0, %c16, %c0_0] : memref<4x18x16xf32, #tpu.memory_space<vmem>>, vector<4x2x16xf32>
    tpu.vector_store %arg3[%c0, %c16, %c0_0], %0 {strides = array<i32>} : memref<4x18x16xf32, #tpu.memory_space<vmem>>, vector<4x2x16xf32>,
    %c0_1 = arith.constant 0 : index
    %c0_2 = arith.constant 0 : index
    %c0_3 = arith.constant 0 : index
    %2 = vector.load %arg1[%c0_1, %c0_2, %c0_3] : memref<4x16x16xf32, #tpu.memory_space<vmem>>, vector<4x16x16xf32>
    %c0_4 = arith.constant 0 : index
    %c0_5 = arith.constant 0 : index
    %c0_6 = arith.constant 0 : index
    %3 = vector.load %arg3[%c0_4, %c0_5, %c0_6] : memref<4x18x16xf32, #tpu.memory_space<vmem>>, vector<4x16x16xf32>
    tpu.vector_store %arg3[%c0_4, %c0_5, %c0_6], %2 {strides = array<i32>} : memref<4x18x16xf32, #tpu.memory_space<vmem>>, vector<4x16x16xf32>,
    %c0_7 = arith.constant 0 : index
    %c0_8 = arith.constant 0 : index
    %c0_9 = arith.constant 0 : index
    %4 = tpu.strided_load %arg3[%c0_7, %c0_8, %c0_9] {strides = array<i32: 1, 3, 1>} : memref<4x18x16xf32, #tpu.memory_space<vmem>>, vector<4x6x16xf32>
    %c0_10 = arith.constant 0 : index
    %c1 = arith.constant 1 : index
    %c0_11 = arith.constant 0 : index
    %5 = tpu.strided_load %arg3[%c0_10, %c1, %c0_11] {strides = array<i32: 1, 3, 1>} : memref<4x18x16xf32, #tpu.memory_space<vmem>>, vector<4x6x16xf32>
    %6 = arith.maximumf %4, %5 : vector<4x6x16xf32>
    %c0_12 = arith.constant 0 : index
    %c2 = arith.constant 2 : index
    %c0_13 = arith.constant 0 : index
    %7 = tpu.strided_load %arg3[%c0_12, %c2, %c0_13] {strides = array<i32: 1, 3, 1>} : memref<4x18x16xf32, #tpu.memory_space<vmem>>, vector<4x6x16xf32>
    %8 = arith.maximumf %6, %7 : vector<4x6x16xf32>
    %cst_14 = arith.constant 0xFF800000 : f32
    %9 = vector.broadcast %cst_14 : f32 to vector<4x2x6xf32>
    %c0_15 = arith.constant 0 : index
    %c16_16 = arith.constant 16 : index
    %c0_17 = arith.constant 0 : index
    %10 = vector.load %arg4[%c0_15, %c16_16, %c0_17] : memref<4x18x6xf32, #tpu.memory_space<vmem>>, vector<4x2x6xf32>
    tpu.vector_store %arg4[%c0_15, %c16_16, %c0_17], %9 {strides = array<i32>} : memref<4x18x6xf32, #tpu.memory_space<vmem>>, vector<4x2x6xf32>,
    %11 = tpu.transpose %8, [0, 2, 1] : vector<4x6x16xf32> -> vector<4x16x6xf32>
    %c0_18 = arith.constant 0 : index
    %c0_19 = arith.constant 0 : index
    %c0_20 = arith.constant 0 : index
    %12 = vector.load %arg4[%c0_18, %c0_19, %c0_20] : memref<4x18x6xf32, #tpu.memory_space<vmem>>, vector<4x16x6xf32>
    tpu.vector_store %arg4[%c0_18, %c0_19, %c0_20], %11 {strides = array<i32>} : memref<4x18x6xf32, #tpu.memory_space<vmem>>, vector<4x16x6xf32>,
    %c0_21 = arith.constant 0 : index
    %c0_22 = arith.constant 0 : index
    %c0_23 = arith.constant 0 : index
    %13 = tpu.strided_load %arg4[%c0_21, %c0_22, %c0_23] {strides = array<i32: 1, 3, 1>} : memref<4x18x6xf32, #tpu.memory_space<vmem>>, vector<4x6x6xf32>
    %c0_24 = arith.constant 0 : index
    %c1_25 = arith.constant 1 : index
    %c0_26 = arith.constant 0 : index
    %14 = tpu.strided_load %arg4[%c0_24, %c1_25, %c0_26] {strides = array<i32: 1, 3, 1>} : memref<4x18x6xf32, #tpu.memory_space<vmem>>, vector<4x6x6xf32>
    %15 = arith.maximumf %13, %14 : vector<4x6x6xf32>
    %c0_27 = arith.constant 0 : index
    %c2_28 = arith.constant 2 : index
    %c0_29 = arith.constant 0 : index
    %16 = tpu.strided_load %arg4[%c0_27, %c2_28, %c0_29] {strides = array<i32: 1, 3, 1>} : memref<4x18x6xf32, #tpu.memory_space<vmem>>, vector<4x6x6xf32>
    %17 = arith.maximumf %15, %16 : vector<4x6x6xf32>
    %18 = tpu.transpose %17, [0, 2, 1] : vector<4x6x6xf32> -> vector<4x6x6xf32>
    %c0_30 = arith.constant 0 : index
    %c0_31 = arith.constant 0 : index
    %c0_32 = arith.constant 0 : index
    %19 = vector.load %arg2[%c0_30, %c0_31, %c0_32] : memref<4x6x6xf32, #tpu.memory_space<vmem>>, vector<4x6x6xf32>
    tpu.vector_store %arg2[%c0_30, %c0_31, %c0_32], %18 {strides = array<i32>} : memref<4x6x6xf32, #tpu.memory_space<vmem>>, vector<4x6x6xf32>,
    return
  }
  func.func @transform_0(%arg0: i32) -> (i32, i32, i32) {
    %c0_i32 = arith.constant 0 : i32
    %c0_i32_0 = arith.constant 0 : i32
    %c0_i32_1 = arith.constant 0 : i32
    return %arg0, %c0_i32, %c0_i32_0 : i32, i32, i32
  }
  func.func @transform_1(%arg0: i32) -> (i32, i32, i32) {
    %c0_i32 = arith.constant 0 : i32
    %c0_i32_0 = arith.constant 0 : i32
    %c0_i32_1 = arith.constant 0 : i32
    return %arg0, %c0_i32, %c0_i32_0 : i32, i32, i32
  }
}

</mosaic_0001>

<llo_original>
// kernel: maxpool2d_ceil.1
$region0: #{maxpool2d_ceil.1}
  #allocation0 [shape = 'u32[]', space=smem, size = 0x4, offset = 0x4, fixed_abs, tag = 'smem constant byte address 0x4 - core index']
  #allocation1 [shape = 'u32[144,128]{1,0:T(1,128)}', space=vmem, size = 0x12000, scoped, tag = 'internal scratch']
  #allocation2 [shape = 'f32[4,18,16]{2,1,0:T(8,128)}', space=vmem, size = 0xc000, scoped, tag = 'scratch operand']
  #allocation3 [shape = 'f32[4,18,6]{2,1,0:T(8,128)}', space=vmem, size = 0xc000, scoped, tag = 'scratch operand']
  %s0 = inlined_call_operand.hbm [shape: f32[8,16,16], index: 0, kind: input, shape index: {}]
  %s1 = inlined_call_operand.vmem [shape: f32[8,6,6], index: 1, kind: output, shape index: {}]
  %s2 = sld [smem:[#allocation0]]
  $region41: #{maxpool2d_ceil.1} parent=0
    _
  %s4 = ssub.s32 1, %s2
  %s5 = scalar_select 0, %s4, %s2
  $region1: #{maxpool2d_ceil.1} parent=0
    #allocation4 [shape = 'u8[65536]{0}', space=vmem, size = 0x10000, scoped, tag = 'input window, operand 0']
    #allocation5 [shape = 's32[2]{0}', space=sflag, size = 0x8, scoped, tag = 'scoped memory for maxpool2d_ceil.1']
    %6 = vsyncpa [#allocation5], 0
    %s7 = scalar_lea.sflag [#allocation5], 1
    %8 = vsyncpa %s7, 0
    loop: start=0, step=1, limit=4
    $region2: #{maxpool2d_ceil.1} parent=1 // loop_pre_header
      _
    $region3: #{maxpool2d_ceil.1} parent=1 // loop_header
      %s10 = sphi 0, %s14
      %p11 = scmp.ge.s32.totalorder %s10, 4
      %s20 = sphi 0, %s22
      %s23 = sphi 0, %s20
      %s24 = sphi 0, %s23
      %s40 = sphi 0, %s24
      %s46 = sphi 0, %s48
      %s49 = sphi 0, %s46
      %s50 = sphi 0, %s49
      %s66 = sphi 0, %s50
    $region4: #{maxpool2d_ceil.1} parent=1 // loop_header_branch
      %13 = sbr.rel (%p11) target = $region8
    $region5: #{maxpool2d_ceil.1} parent=1 // loop_body
      %s15 = ssub.s32 %s10, 1
      %s16 = ssub.s32 %s10, 2
      %s17 = sadd.s32 %s10, 1
      %s18 = ssub.s32 %s10, %s17
      %p19 = scmp.eq.s32.totalorder %s18, 0
      %s21 = sadd.s32 %s20, 1
      %s22 = scalar_select %p19, %s20, %s21
      %p25 = pneg %p19
      %p26 = scmp.eq.s32.totalorder %s10, 1
      %p27 = por %p25, %p26
      %p28 = scmp.ne.s32.totalorder %s20, %s23
      %p29 = scmp.eq.s32.totalorder %s10, 0
      %p30 = por %p28, %p29
      %p31 = scmp.ne.s32.totalorder %s20, %s23
      %p32 = scmp.eq.s32.totalorder %s15, 1
      %p33 = por %p31, %p32
      %p34 = scmp.ne.s32.totalorder %s23, %s24
      %p35 = scmp.eq.s32.totalorder %s15, 0
      %p36 = por %p34, %p35
      %p37 = scmp.ne.s32.totalorder %s23, %s24
      %p38 = scmp.eq.s32.totalorder %s16, 1
      %p39 = por %p37, %p38
      %p41 = scmp.ne.s32.totalorder %s24, %s40
      %p42 = scmp.eq.s32.totalorder %s16, 0
      %p43 = por %p41, %p42
      %s44 = ssub.s32 %s10, %s17
      %p45 = scmp.eq.s32.totalorder %s44, 0
      %s47 = sadd.s32 %s46, 1
      %s48 = scalar_select %p45, %s46, %s47
      %p51 = pneg %p45
      %p52 = scmp.eq.s32.totalorder %s10, 1
      %p53 = por %p51, %p52
      %p54 = scmp.ne.s32.totalorder %s46, %s49
      %p55 = scmp.eq.s32.totalorder %s10, 0
      %p56 = por %p54, %p55
      %p57 = scmp.ne.s32.totalorder %s46, %s49
      %p58 = scmp.eq.s32.totalorder %s15, 1
      %p59 = por %p57, %p58
      %p60 = scmp.ne.s32.totalorder %s49, %s50
      %p61 = scmp.eq.s32.totalorder %s15, 0
      %p62 = por %p60, %p61
      %p63 = scmp.ne.s32.totalorder %s49, %s50
      %p64 = scmp.eq.s32.totalorder %s16, 1
      %p65 = por %p63, %p64
      %p67 = scmp.ne.s32.totalorder %s50, %s66
      %p68 = scmp.eq.s32.totalorder %s16, 0
      %p69 = por %p67, %p68
      %p70 = scmp.le.s32.totalorder 1, %s10
      %p71 = scmp.lt.s32.totalorder %s10, 3
      %p72 = pnand %p70, %p71
      %p73 = pneg %p72
      // Predicated region
      $region9: #{maxpool2d_ceil.1} parent=5 // pred_check
        _
      $region10: #{maxpool2d_ceil.1} parent=5 // pred_check_branch
        %75 = sbr.rel (%p72) target = $region12
      $region11: #{maxpool2d_ceil.1} parent=5 // pred_region
        %s76 = ssub.s32 %s10, 1
      $region12: #{maxpool2d_ceil.1} parent=5 // pred_fallthru
        _
      %p77 = scmp.lt.s32.totalorder %s10, 2
      // Predicated region
      $region13: #{maxpool2d_ceil.1} parent=5 // pred_check
        %p78 = pneg %p77
      $region14: #{maxpool2d_ceil.1} parent=5 // pred_check_branch
        %80 = sbr.rel (%p78) target = $region16
      $region15: #{maxpool2d_ceil.1} parent=5 // pred_region
        // Predicated region
        $region17: #{maxpool2d_ceil.1} parent=15 // pred_check
          %p81 = pneg %p30
        $region18: #{maxpool2d_ceil.1} parent=15 // pred_check_branch
          %83 = sbr.rel (%p81) target = $region20
        $region19: #{maxpool2d_ceil.1} parent=15 // pred_region
          %s84 = sand.u32 %s20, 1
          %s85 = scalar_lea.sflag [#allocation5], %s84
          %s86 = sand.u32 %s20, 1
          %s87 = smul.addr %s86, 64
          %s88 = scalar_lea.vmem [#allocation4], %s87
          %s89 = smul.u32 4, %s10
          %s91 = ssub.s32 1024, 1024
          %92 = vsyncadd %s85, %s91
          %s93 = smul.addr %s89, 2
          %s94 = smul.addr %s93, 128
          %s95 = scalar_lea.hbm %s0, %s94
          %s96 = sshll.u32 %s88, 4
          %s97 = int_to_ptr.vmem [resolvable:$true] %s96
          %102 = dma.hbm_to_vmem [thread:$0]  %s95, 1024, %s97, %s85, 128, 128, 8
        $region20: #{maxpool2d_ceil.1} parent=15 // pred_fallthru
          _
      $region16: #{maxpool2d_ceil.1} parent=5 // pred_fallthru
        _
      %p103 = scmp.le.s32.totalorder 1, %s10
      %p104 = scmp.lt.s32.totalorder %s10, 3
      %p105 = pnand %p103, %p104
      %p106 = pneg %p105
      // Predicated region
      $region21: #{maxpool2d_ceil.1} parent=5 // pred_check
        _
      $region22: #{maxpool2d_ceil.1} parent=5 // pred_check_branch
        %108 = sbr.rel (%p105) target = $region24
      $region23: #{maxpool2d_ceil.1} parent=5 // pred_region
        %s109 = ssub.s32 %s10, 1
        %s110 = sand.u32 %s23, 1
        %s111 = scalar_lea.sflag [#allocation5], %s110
        %s112 = sand.u32 %s23, 1
        %s113 = smul.addr %s112, 64
        %s114 = scalar_lea.vmem [#allocation4], %s113
        // Predicated region
        $region25: #{maxpool2d_ceil.1} parent=23 // pred_check
          %p115 = pneg %p36
        $region26: #{maxpool2d_ceil.1} parent=23 // pred_check_branch
          %117 = sbr.rel (%p115) target = $region28
        $region27: #{maxpool2d_ceil.1} parent=23 // pred_region
          %118 = dma.done %s111, 1024
        $region28: #{maxpool2d_ceil.1} parent=23 // pred_fallthru
          _
        %s119 = sand.u32 %s23, 1
        %s120 = scalar_lea.sflag [#allocation5], %s119
        %s121 = sand.u32 %s23, 1
        %s122 = smul.addr %s121, 64
        %s123 = scalar_lea.vmem [#allocation4], %s122
        %p124 = pneg %p36
        %p125 = pneg %p33
        %p126 = pneg %p62
        %p127 = pneg %p59
        %s128 = smul.u32 4, %s15
        %p129 = scmp.lt.s32.totalorder %s128, 7
        %s130 = scalar_select %p129, %s128, 7
        %s131 = smul.addr %s130, 8
        %s132 = scalar_lea.vmem %s1, %s131
        %s133 = smul.u32 4, %s15
        %s134 = smul.u32 4, %s15
        %p135 = scmp.lt.s32.totalorder %s134, 7
        %s136 = scalar_select %p135, %s134, 7
        %s137 = smul.addr %s136, 8
        %s138 = scalar_lea.vmem %s1, %s137
        %s139 = smul.u32 4, %s15
        %vm140 = vcmask 123904
        %141 = vst.msk [vmem:[#allocation2 + $0x10] sm:$0x3] %vm140, -inf
        %142 = vst.msk [vmem:[#allocation2 + $0x28] sm:$0x3] %vm140, -inf
        %143 = vst.msk [vmem:[#allocation2 + $0x40] sm:$0x3] %vm140, -inf
        %144 = vst.msk [vmem:[#allocation2 + $0x58] sm:$0x3] %vm140, -inf
        %v145 = vld [vmem:[%s114] sm:$0xff]
        %v146 = vld [vmem:[%s114 + $0x8] sm:$0xff]
        %v147 = vld [vmem:[%s114 + $0x10] sm:$0xff]
        %v148 = vld [vmem:[%s114 + $0x18] sm:$0xff]
        %v149 = vld [vmem:[%s114 + $0x20] sm:$0xff]
        %v150 = vld [vmem:[%s114 + $0x28] sm:$0xff]
        %v151 = vld [vmem:[%s114 + $0x30] sm:$0xff]
        %v152 = vld [vmem:[%s114 + $0x38] sm:$0xff]
        %vm153 = vcmask 130048
        %154 = vst.msk [vmem:[#allocation2] sm:$0xff] %vm153, %v145
        %155 = vst.msk [vmem:[#allocation2 + $0x8] sm:$0xff] %vm153, %v146
        %156 = vst.msk [vmem:[#allocation2 + $0x18] sm:$0xff] %vm153, %v147
        %157 = vst.msk [vmem:[#allocation2 + $0x20] sm:$0xff] %vm153, %v148
        %158 = vst.msk [vmem:[#allocation2 + $0x30] sm:$0xff] %vm153, %v149
        %159 = vst.msk [vmem:[#allocation2 + $0x38] sm:$0xff] %vm153, %v150
        %160 = vst.msk [vmem:[#allocation2 + $0x48] sm:$0xff] %vm153, %v151
        %161 = vst.msk [vmem:[#allocation2 + $0x50] sm:$0xff] %vm153, %v152
        %v162 = vld [vmem:[#allocation2] ss:$3 sm:$0x3f]
        %s163 = scalar_lea.vmem [#allocation2], 24
        %v164 = vld [vmem:[%s163] ss:$3 sm:$0x3f]
        %s165 = scalar_lea.vmem [#allocation2], 48
        %v166 = vld [vmem:[%s165] ss:$3 sm:$0x3f]
        %s167 = scalar_lea.vmem [#allocation2], 72
        %v168 = vld [vmem:[%s167] ss:$3 sm:$0x3f]
        %s169 = scalar_lea.vmem [#allocation2], 1
        %v170 = vld [vmem:[%s169] ss:$3 sm:$0x3f]
        %s171 = scalar_lea.vmem [#allocation2], 25
        %v172 = vld [vmem:[%s171] ss:$3 sm:$0x3f]
        %s173 = scalar_lea.vmem [#allocation2], 49
        %v174 = vld [vmem:[%s173] ss:$3 sm:$0x3f]
        %s175 = scalar_lea.vmem [#allocation2], 73
        %v176 = vld [vmem:[%s175] ss:$3 sm:$0x3f]
        %v177 = vmax.f32 %v162, %v170
        %v178 = vmax.f32 %v164, %v172
        %v179 = vmax.f32 %v166, %v174
        %v180 = vmax.f32 %v168, %v176
        %s181 = scalar_lea.vmem [#allocation2], 2
        %v182 = vld [vmem:[%s181] ss:$3 sm:$0x3f]
        %s183 = scalar_lea.vmem [#allocation2], 26
        %v184 = vld [vmem:[%s183] ss:$3 sm:$0x3f]
        %s185 = scalar_lea.vmem [#allocation2], 50
        %v186 = vld [vmem:[%s185] ss:$3 sm:$0x3f]
        %s187 = scalar_lea.vmem [#allocation2], 74
        %v188 = vld [vmem:[%s187] ss:$3 sm:$0x3f]
        %v189 = vmax.f32 %v177, %v182
        %v190 = vmax.f32 %v178, %v184
        %v191 = vmax.f32 %v179, %v186
        %v192 = vmax.f32 %v180, %v188
        %vm193 = vcmask 41984
        %194 = vst.msk [vmem:[#allocation3 + $0x10] sm:$0x3] %vm193, -inf
        %195 = vst.msk [vmem:[#allocation3 + $0x28] sm:$0x3] %vm193, -inf
        %196 = vst.msk [vmem:[#allocation3 + $0x40] sm:$0x3] %vm193, -inf
        %197 = vst.msk [vmem:[#allocation3 + $0x58] sm:$0x3] %vm193, -inf
        %198 = vxpose.xlu0.b32.start [1/16] %v189, 128
        %199 = vxpose.xlu0.b32.cont [2/16] 0.0, 128
        %200 = vxpose.xlu0.b32.cont [3/16] 0.0, 128
        %201 = vxpose.xlu0.b32.cont [4/16] 0.0, 128
        %202 = vxpose.xlu0.b32.cont [5/16] 0.0, 128
        %203 = vxpose.xlu0.b32.cont [6/16] 0.0, 128
        %204 = vxpose.xlu0.b32.cont [7/16] 0.0, 128
        %205 = vxpose.xlu0.b32.cont [8/16] 0.0, 128
        %206 = vxpose.xlu0.b32.cont [9/16] 0.0, 128
        %207 = vxpose.xlu0.b32.cont [10/16] 0.0, 128
        %208 = vxpose.xlu0.b32.cont [11/16] 0.0, 128
        %209 = vxpose.xlu0.b32.cont [12/16] 0.0, 128
        %210 = vxpose.xlu0.b32.cont [13/16] 0.0, 128
        %211 = vxpose.xlu0.b32.cont [14/16] 0.0, 128
        %212 = vxpose.xlu0.b32.cont [15/16] 0.0, 128
        %213 = vxpose.xlu0.b32.end [16/16] 0.0, 128
        %v214 = vpop.trf.xlu0
        %v215 = vpop.trf.xlu0
        %v216 = vpop.trf.xlu0
        %v217 = vpop.trf.xlu0
        %v218 = vpop.trf.xlu0
        %v219 = vpop.trf.xlu0
        %v220 = vpop.trf.xlu0
        %v221 = vpop.trf.xlu0
        %v222 = vpop.trf.xlu0
        %v223 = vpop.trf.xlu0
        %v224 = vpop.trf.xlu0
        %v225 = vpop.trf.xlu0
        %v226 = vpop.trf.xlu0
        %v227 = vpop.trf.xlu0
        %v228 = vpop.trf.xlu0
        %v229 = vpop.trf.xlu0
        %230 = vxpose.xlu0.b32.start [1/16] %v190, 128
        %231 = vxpose.xlu0.b32.cont [2/16] 0.0, 128
        %232 = vxpose.xlu0.b32.cont [3/16] 0.0, 128
        %233 = vxpose.xlu0.b32.cont [4/16] 0.0, 128
        %234 = vxpose.xlu0.b32.cont [5/16] 0.0, 128
        %235 = vxpose.xlu0.b32.cont [6/16] 0.0, 128
        %236 = vxpose.xlu0.b32.cont [7/16] 0.0, 128
        %237 = vxpose.xlu0.b32.cont [8/16] 0.0, 128
        %238 = vxpose.xlu0.b32.cont [9/16] 0.0, 128
        %239 = vxpose.xlu0.b32.cont [10/16] 0.0, 128
        %240 = vxpose.xlu0.b32.cont [11/16] 0.0, 128
        %241 = vxpose.xlu0.b32.cont [12/16] 0.0, 128
        %242 = vxpose.xlu0.b32.cont [13/16] 0.0, 128
        %243 = vxpose.xlu0.b32.cont [14/16] 0.0, 128
        %244 = vxpose.xlu0.b32.cont [15/16] 0.0, 128
        %245 = vxpose.xlu0.b32.end [16/16] 0.0, 128
        %v246 = vpop.trf.xlu0
        %v247 = vpop.trf.xlu0
        %v248 = vpop.trf.xlu0
        %v249 = vpop.trf.xlu0
        %v250 = vpop.trf.xlu0
        %v251 = vpop.trf.xlu0
        %v252 = vpop.trf.xlu0
        %v253 = vpop.trf.xlu0
        %v254 = vpop.trf.xlu0
        %v255 = vpop.trf.xlu0
        %v256 = vpop.trf.xlu0
        %v257 = vpop.trf.xlu0
        %v258 = vpop.trf.xlu0
        %v259 = vpop.trf.xlu0
        %v260 = vpop.trf.xlu0
        %v261 = vpop.trf.xlu0
        %262 = vxpose.xlu0.b32.start [1/16] %v191, 128
        %263 = vxpose.xlu0.b32.cont [2/16] 0.0, 128
        %264 = vxpose.xlu0.b32.cont [3/16] 0.0, 128
        %265 = vxpose.xlu0.b32.cont [4/16] 0.0, 128
        %266 = vxpose.xlu0.b32.cont [5/16] 0.0, 128
        %267 = vxpose.xlu0.b32.cont [6/16] 0.0, 128
        %268 = vxpose.xlu0.b32.cont [7/16] 0.0, 128
        %269 = vxpose.xlu0.b32.cont [8/16] 0.0, 128
        %270 = vxpose.xlu0.b32.cont [9/16] 0.0, 128
        %271 = vxpose.xlu0.b32.cont [10/16] 0.0, 128
        %272 = vxpose.xlu0.b32.cont [11/16] 0.0, 128
        %273 = vxpose.xlu0.b32.cont [12/16] 0.0, 128
        %274 = vxpose.xlu0.b32.cont [13/16] 0.0, 128
        %275 = vxpose.xlu0.b32.cont [14/16] 0.0, 128
        %276 = vxpose.xlu0.b32.cont [15/16] 0.0, 128
        %277 = vxpose.xlu0.b32.end [16/16] 0.0, 128
        %v278 = vpop.trf.xlu0
        %v279 = vpop.trf.xlu0
        %v280 = vpop.trf.xlu0
        %v281 = vpop.trf.xlu0
        %v282 = vpop.trf.xlu0
        %v283 = vpop.trf.xlu0
        %v284 = vpop.trf.xlu0
        %v285 = vpop.trf.xlu0
        %v286 = vpop.trf.xlu0
        %v287 = vpop.trf.xlu0
        %v288 = vpop.trf.xlu0
        %v289 = vpop.trf.xlu0
        %v290 = vpop.trf.xlu0
        %v291 = vpop.trf.xlu0
        %v292 = vpop.trf.xlu0
        %v293 = vpop.trf.xlu0
        %294 = vxpose.xlu0.b32.start [1/16] %v192, 128
        %295 = vxpose.xlu0.b32.cont [2/16] 0.0, 128
        %296 = vxpose.xlu0.b32.cont [3/16] 0.0, 128
        %297 = vxpose.xlu0.b32.cont [4/16] 0.0, 128
        %298 = vxpose.xlu0.b32.cont [5/16] 0.0, 128
        %299 = vxpose.xlu0.b32.cont [6/16] 0.0, 128
        %300 = vxpose.xlu0.b32.cont [7/16] 0.0, 128
        %301 = vxpose.xlu0.b32.cont [8/16] 0.0, 128
        %302 = vxpose.xlu0.b32.cont [9/16] 0.0, 128
        %303 = vxpose.xlu0.b32.cont [10/16] 0.0, 128
        %304 = vxpose.xlu0.b32.cont [11/16] 0.0, 128
        %305 = vxpose.xlu0.b32.cont [12/16] 0.0, 128
        %306 = vxpose.xlu0.b32.cont [13/16] 0.0, 128
        %307 = vxpose.xlu0.b32.cont [14/16] 0.0, 128
        %308 = vxpose.xlu0.b32.cont [15/16] 0.0, 128
        %309 = vxpose.xlu0.b32.end [16/16] 0.0, 128
        %v310 = vpop.trf.xlu0
        %v311 = vpop.trf.xlu0
        %v312 = vpop.trf.xlu0
        %v313 = vpop.trf.xlu0
        %v314 = vpop.trf.xlu0
        %v315 = vpop.trf.xlu0
        %v316 = vpop.trf.xlu0
        %v317 = vpop.trf.xlu0
        %v318 = vpop.trf.xlu0
        %v319 = vpop.trf.xlu0
        %v320 = vpop.trf.xlu0
        %v321 = vpop.trf.xlu0
        %v322 = vpop.trf.xlu0
        %v323 = vpop.trf.xlu0
        %v324 = vpop.trf.xlu0
        %v325 = vpop.trf.xlu0
        %vm326 = vcmask 48128
        %327 = vst.msk [vmem:[#allocation3] sm:$0xff] %vm326, %v214
        %328 = vst.msk [vmem:[#allocation3 + $0x8] sm:$0xff] %vm326, %v215
        %329 = vst.msk [vmem:[#allocation3 + $0x18] sm:$0xff] %vm326, %v246
        %330 = vst.msk [vmem:[#allocation3 + $0x20] sm:$0xff] %vm326, %v247
        %331 = vst.msk [vmem:[#allocation3 + $0x30] sm:$0xff] %vm326, %v278
        %332 = vst.msk [vmem:[#allocation3 + $0x38] sm:$0xff] %vm326, %v279
        %333 = vst.msk [vmem:[#allocation3 + $0x48] sm:$0xff] %vm326, %v310
        %334 = vst.msk [vmem:[#allocation3 + $0x50] sm:$0xff] %vm326, %v311
        %v335 = vld [vmem:[#allocation3] ss:$3 sm:$0x3f]
        %s336 = scalar_lea.vmem [#allocation3], 24
        %v337 = vld [vmem:[%s336] ss:$3 sm:$0x3f]
        %s338 = scalar_lea.vmem [#allocation3], 48
        %v339 = vld [vmem:[%s338] ss:$3 sm:$0x3f]
        %s340 = scalar_lea.vmem [#allocation3], 72
        %v341 = vld [vmem:[%s340] ss:$3 sm:$0x3f]
        %s342 = scalar_lea.vmem [#allocation3], 1
        %v343 = vld [vmem:[%s342] ss:$3 sm:$0x3f]
        %s344 = scalar_lea.vmem [#allocation3], 25
        %v345 = vld [vmem:[%s344] ss:$3 sm:$0x3f]
        %s346 = scalar_lea.vmem [#allocation3], 49
        %v347 = vld [vmem:[%s346] ss:$3 sm:$0x3f]
        %s348 = scalar_lea.vmem [#allocation3], 73
        %v349 = vld [vmem:[%s348] ss:$3 sm:$0x3f]
        %v350 = vmax.f32 %v335, %v343
        %v351 = vmax.f32 %v337, %v345
        %v352 = vmax.f32 %v339, %v347
        %v353 = vmax.f32 %v341, %v349
        %s354 = scalar_lea.vmem [#allocation3], 2
        %v355 = vld [vmem:[%s354] ss:$3 sm:$0x3f]
        %s356 = scalar_lea.vmem [#allocation3], 26
        %v357 = vld [vmem:[%s356] ss:$3 sm:$0x3f]
        %s358 = scalar_lea.vmem [#allocation3], 50
        %v359 = vld [vmem:[%s358] ss:$3 sm:$0x3f]
        %s360 = scalar_lea.vmem [#allocation3], 74
        %v361 = vld [vmem:[%s360] ss:$3 sm:$0x3f]
        %v362 = vmax.f32 %v350, %v355
        %v363 = vmax.f32 %v351, %v357
        %v364 = vmax.f32 %v352, %v359
        %v365 = vmax.f32 %v353, %v361
        %366 = vxpose.xlu0.b32.start [1/16] %v362, 128
        %367 = vxpose.xlu0.b32.cont [2/16] 0.0, 128
        %368 = vxpose.xlu0.b32.cont [3/16] 0.0, 128
        %369 = vxpose.xlu0.b32.cont [4/16] 0.0, 128
        %370 = vxpose.xlu0.b32.cont [5/16] 0.0, 128
        %371 = vxpose.xlu0.b32.cont [6/16] 0.0, 128
        %372 = vxpose.xlu0.b32.cont [7/16] 0.0, 128
        %373 = vxpose.xlu0.b32.cont [8/16] 0.0, 128
        %374 = vxpose.xlu0.b32.cont [9/16] 0.0, 128
        %375 = vxpose.xlu0.b32.cont [10/16] 0.0, 128
        %376 = vxpose.xlu0.b32.cont [11/16] 0.0, 128
        %377 = vxpose.xlu0.b32.cont [12/16] 0.0, 128
        %378 = vxpose.xlu0.b32.cont [13/16] 0.0, 128
        %379 = vxpose.xlu0.b32.cont [14/16] 0.0, 128
        %380 = vxpose.xlu0.b32.cont [15/16] 0.0, 128
        %381 = vxpose.xlu0.b32.end [16/16] 0.0, 128
        %v382 = vpop.trf.xlu0
        %v383 = vpop.trf.xlu0
        %v384 = vpop.trf.xlu0
        %v385 = vpop.trf.xlu0
        %v386 = vpop.trf.xlu0
        %v387 = vpop.trf.xlu0
        %v388 = vpop.trf.xlu0
        %v389 = vpop.trf.xlu0
        %v390 = vpop.trf.xlu0
        %v391 = vpop.trf.xlu0
        %v392 = vpop.trf.xlu0
        %v393 = vpop.trf.xlu0
        %v394 = vpop.trf.xlu0
        %v395 = vpop.trf.xlu0
        %v396 = vpop.trf.xlu0
        %v397 = vpop.trf.xlu0
        %398 = vxpose.xlu0.b32.start [1/16] %v363, 128
        %399 = vxpose.xlu0.b32.cont [2/16] 0.0, 128
        %400 = vxpose.xlu0.b32.cont [3/16] 0.0, 128
        %401 = vxpose.xlu0.b32.cont [4/16] 0.0, 128
        %402 = vxpose.xlu0.b32.cont [5/16] 0.0, 128
        %403 = vxpose.xlu0.b32.cont [6/16] 0.0, 128
        %404 = vxpose.xlu0.b32.cont [7/16] 0.0, 128
        %405 = vxpose.xlu0.b32.cont [8/16] 0.0, 128
        %406 = vxpose.xlu0.b32.cont [9/16] 0.0, 128
        %407 = vxpose.xlu0.b32.cont [10/16] 0.0, 128
        %408 = vxpose.xlu0.b32.cont [11/16] 0.0, 128
        %409 = vxpose.xlu0.b32.cont [12/16] 0.0, 128
        %410 = vxpose.xlu0.b32.cont [13/16] 0.0, 128
        %411 = vxpose.xlu0.b32.cont [14/16] 0.0, 128
        %412 = vxpose.xlu0.b32.cont [15/16] 0.0, 128
        %413 = vxpose.xlu0.b32.end [16/16] 0.0, 128
        %v414 = vpop.trf.xlu0
        %v415 = vpop.trf.xlu0
        %v416 = vpop.trf.xlu0
        %v417 = vpop.trf.xlu0
        %v418 = vpop.trf.xlu0
        %v419 = vpop.trf.xlu0
        %v420 = vpop.trf.xlu0
        %v421 = vpop.trf.xlu0
        %v422 = vpop.trf.xlu0
        %v423 = vpop.trf.xlu0
        %v424 = vpop.trf.xlu0
        %v425 = vpop.trf.xlu0
        %v426 = vpop.trf.xlu0
        %v427 = vpop.trf.xlu0
        %v428 = vpop.trf.xlu0
        %v429 = vpop.trf.xlu0
        %430 = vxpose.xlu0.b32.start [1/16] %v364, 128
        %431 = vxpose.xlu0.b32.cont [2/16] 0.0, 128
        %432 = vxpose.xlu0.b32.cont [3/16] 0.0, 128
        %433 = vxpose.xlu0.b32.cont [4/16] 0.0, 128
        %434 = vxpose.xlu0.b32.cont [5/16] 0.0, 128
        %435 = vxpose.xlu0.b32.cont [6/16] 0.0, 128
        %436 = vxpose.xlu0.b32.cont [7/16] 0.0, 128
        %437 = vxpose.xlu0.b32.cont [8/16] 0.0, 128
        %438 = vxpose.xlu0.b32.cont [9/16] 0.0, 128
        %439 = vxpose.xlu0.b32.cont [10/16] 0.0, 128
        %440 = vxpose.xlu0.b32.cont [11/16] 0.0, 128
        %441 = vxpose.xlu0.b32.cont [12/16] 0.0, 128
        %442 = vxpose.xlu0.b32.cont [13/16] 0.0, 128
        %443 = vxpose.xlu0.b32.cont [14/16] 0.0, 128
        %444 = vxpose.xlu0.b32.cont [15/16] 0.0, 128
        %445 = vxpose.xlu0.b32.end [16/16] 0.0, 128
        %v446 = vpop.trf.xlu0
        %v447 = vpop.trf.xlu0
        %v448 = vpop.trf.xlu0
        %v449 = vpop.trf.xlu0
        %v450 = vpop.trf.xlu0
        %v451 = vpop.trf.xlu0
        %v452 = vpop.trf.xlu0
        %v453 = vpop.trf.xlu0
        %v454 = vpop.trf.xlu0
        %v455 = vpop.trf.xlu0
        %v456 = vpop.trf.xlu0
        %v457 = vpop.trf.xlu0
        %v458 = vpop.trf.xlu0
        %v459 = vpop.trf.xlu0
        %v460 = vpop.trf.xlu0
        %v461 = vpop.trf.xlu0
        %462 = vxpose.xlu0.b32.start [1/16] %v365, 128
        %463 = vxpose.xlu0.b32.cont [2/16] 0.0, 128
        %464 = vxpose.xlu0.b32.cont [3/16] 0.0, 128
        %465 = vxpose.xlu0.b32.cont [4/16] 0.0, 128
        %466 = vxpose.xlu0.b32.cont [5/16] 0.0, 128
        %467 = vxpose.xlu0.b32.cont [6/16] 0.0, 128
        %468 = vxpose.xlu0.b32.cont [7/16] 0.0, 128
        %469 = vxpose.xlu0.b32.cont [8/16] 0.0, 128
        %470 = vxpose.xlu0.b32.cont [9/16] 0.0, 128
        %471 = vxpose.xlu0.b32.cont [10/16] 0.0, 128
        %472 = vxpose.xlu0.b32.cont [11/16] 0.0, 128
        %473 = vxpose.xlu0.b32.cont [12/16] 0.0, 128
        %474 = vxpose.xlu0.b32.cont [13/16] 0.0, 128
        %475 = vxpose.xlu0.b32.cont [14/16] 0.0, 128
        %476 = vxpose.xlu0.b32.cont [15/16] 0.0, 128
        %477 = vxpose.xlu0.b32.end [16/16] 0.0, 128
        %v478 = vpop.trf.xlu0
        %v479 = vpop.trf.xlu0
        %v480 = vpop.trf.xlu0
        %v481 = vpop.trf.xlu0
        %v482 = vpop.trf.xlu0
        %v483 = vpop.trf.xlu0
        %v484 = vpop.trf.xlu0
        %v485 = vpop.trf.xlu0
        %v486 = vpop.trf.xlu0
        %v487 = vpop.trf.xlu0
        %v488 = vpop.trf.xlu0
        %v489 = vpop.trf.xlu0
        %v490 = vpop.trf.xlu0
        %v491 = vpop.trf.xlu0
        %v492 = vpop.trf.xlu0
        %v493 = vpop.trf.xlu0
        %vm494 = vcmask 46080
        %495 = vst.msk [vmem:[%s138] sm:$0x3f] %vm494, %v382
        %496 = vst.msk [vmem:[%s138 + $0x8] sm:$0x3f] %vm494, %v414
        %497 = vst.msk [vmem:[%s138 + $0x10] sm:$0x3f] %vm494, %v446
        %498 = vst.msk [vmem:[%s138 + $0x18] sm:$0x3f] %vm494, %v478
        %s499 = smul.u32 4, %s15
        %p500 = scmp.lt.s32.totalorder %s499, 7
        %s501 = scalar_select %p500, %s499, 7
        %s502 = smul.addr %s501, 8
        %s503 = scalar_lea.vmem %s1, %s502
        // Predicated region
        $region29: #{maxpool2d_ceil.1} parent=23 // pred_check
          %p504 = pneg %p59
        $region30: #{maxpool2d_ceil.1} parent=23 // pred_check_branch
          %506 = sbr.rel (%p504) target = $region32
        $region31: #{maxpool2d_ceil.1} parent=23 // pred_region
          %s507 = smul.u32 4, %s15
        $region32: #{maxpool2d_ceil.1} parent=23 // pred_fallthru
          _
      $region24: #{maxpool2d_ceil.1} parent=5 // pred_fallthru
        _
      %p508 = scmp.le.s32.totalorder 2, %s10
      // Predicated region
      $region33: #{maxpool2d_ceil.1} parent=5 // pred_check
        %p509 = pneg %p508
      $region34: #{maxpool2d_ceil.1} parent=5 // pred_check_branch
        %511 = sbr.rel (%p509) target = $region36
      $region35: #{maxpool2d_ceil.1} parent=5 // pred_region
        %s512 = ssub.s32 %s10, 2
        // Predicated region
        $region37: #{maxpool2d_ceil.1} parent=35 // pred_check
          %p513 = pneg %p65
        $region38: #{maxpool2d_ceil.1} parent=35 // pred_check_branch
          %515 = sbr.rel (%p513) target = $region40
        $region39: #{maxpool2d_ceil.1} parent=35 // pred_region
          %s516 = smul.u32 4, %s16
          %p517 = scmp.lt.s32.totalorder %s516, 7
          %s518 = scalar_select %p517, %s516, 7
          %s519 = smul.addr %s518, 8
          %s520 = scalar_lea.vmem %s1, %s519
        $region40: #{maxpool2d_ceil.1} parent=35 // pred_fallthru
          _
      $region36: #{maxpool2d_ceil.1} parent=5 // pred_fallthru
        _
    $region6: #{maxpool2d_ceil.1} parent=1 // loop_footer
      %s14 = sadd.s32 1, %s10
    $region7: #{maxpool2d_ceil.1} parent=1 // loop_footer_branch
      %9 = sbr.rel target = $region3
    $region8: #{maxpool2d_ceil.1} parent=1 // loop_exit
      _
    %521 = vsyncpa [#allocation5], 1
    %s522 = scalar_lea.sflag [#allocation5], 1
    %523 = vsyncpa %s522, 1

</llo_original>
